<compile_context>
chip_gen: v7x
topology: tpu7x:2x2x1
jax: 0.10.0
libtpu: 0.0.40
codegen_flags: <defaults>
</compile_context>

<pallas_src>
from math import sqrt
import functools

import jax
import jax.numpy as jnp
from jax import lax
from jax.experimental import pallas as pl
from jax.experimental.pallas import tpu as pltpu


def _flash_attn_kernel(q_ref, k_ref, v_ref, mask_ref, o_ref,
                       m_scr, l_scr, acc_scr, *, inv_sqrt_d):
    ki = pl.program_id(3)

    @pl.when(ki == 0)
    def _():
        m_scr[...] = jnp.full_like(m_scr, -jnp.inf)
        l_scr[...] = jnp.zeros_like(l_scr)
        acc_scr[...] = jnp.zeros_like(acc_scr)

    q = q_ref[0, 0]          # (tq, D), native dtype (bf16 stays bf16)
    k = k_ref[0, 0]          # (tk, D)
    v = v_ref[0, 0]          # (tk, D)
    msk = mask_ref[0, 0]     # (bq, bk) int8, bq in {1, tq}, bk in {1, tk}

    # Fold 1/sqrt(D) into Q: tq*D multiplies instead of tq*tk on the scores.
    qs = (q.astype(jnp.float32) * jnp.float32(inv_sqrt_d)).astype(q.dtype)

    # scores = (Q/sqrt(D)) @ K^T, contracting the last dim of both operands
    # (MXU consumes K in its natural (tk, D) layout; no transpose).
    s = lax.dot_general(qs, k, dimension_numbers=(((1,), (1,)), ((), ())),
                        preferred_element_type=jnp.float32)        # (tq, tk) f32

    # masked_fill(mask, -1e9).  (Reference masks before the 1/sqrt(D) scale;
    # both variants saturate to 0 after softmax, identical to tolerance.)
    s = jnp.where(msk != 0, jnp.float32(-1.0e9), s)

    # Online (flash) softmax update.
    m_prev = m_scr[...]                                             # (tq, 1)
    m_new = jnp.maximum(m_prev, jnp.max(s, axis=-1, keepdims=True))
    alpha = jnp.exp(m_prev - m_new)
    p = jnp.exp(s - m_new)                                          # (tq, tk)
    l_scr[...] = alpha * l_scr[...] + jnp.sum(p, axis=-1, keepdims=True)
    acc_scr[...] = alpha * acc_scr[...] + jnp.dot(
        p.astype(v.dtype), v, preferred_element_type=jnp.float32)   # (tq, D)
    m_scr[...] = m_new

    @pl.when(ki == pl.num_programs(3) - 1)
    def _():
        o_ref[0, 0] = (acc_scr[...] *
                       pl.reciprocal(l_scr[...], approx=True)).astype(o_ref.dtype)


def _pick_tile(dim, desired, align):
    """Largest tile <= desired that divides dim and is a multiple of align
    (or the full dim if dim is small / nothing divides)."""
    if dim <= desired:
        return dim
    t = (desired // align) * align
    while t >= align:
        if dim % t == 0:
            return t
        t -= align
    return dim


def calculate_attention(Q, K, V, mask, *, tq=256, tk=512):
    """Pallas equivalent of CalculateAttention.forward."""
    B, H, Sq, D = Q.shape
    Sk = K.shape[2]

    # Keep the mask in its original broadcastable shape (no HBM replication);
    # just normalize to 4-D and to int8 (1/4 the bytes of int32).
    mask = jnp.asarray(mask)
    mask = mask.reshape((1,) * (4 - mask.ndim) + tuple(mask.shape))
    mB, mH, mQ, mK = mask.shape
    for md, fd in zip((mB, mH, mQ, mK), (B, H, Sq, Sk)):
        if md not in (1, fd):
            raise ValueError("mask must be broadcastable to (B, H, Sq, Sk)")
    mask = mask.astype(jnp.int8)

    # Tile sizes budgeted for the smallest VMEM (v7x: 64 MiB phys / 32 MiB scoped).
    tq = _pick_tile(Sq, tq, 8)
    tk = _pick_tile(Sk, tk, 128)
    grid = (B, H, Sq // tq, Sk // tk)

    bq = tq if mQ != 1 else 1
    bk = tk if mK != 1 else 1

    def mask_index_map(b, h, qi, ki):
        # Re-select block 0 along broadcast dims instead of replicating in HBM.
        return (b if mB != 1 else 0,
                h if mH != 1 else 0,
                qi if mQ != 1 else 0,
                ki if mK != 1 else 0)

    kernel = functools.partial(_flash_attn_kernel, inv_sqrt_d=1.0 / sqrt(float(D)))

    # TODO(synk): for head_dim < 128, pack heads into the lane dim so output
    # stores are lane-dense (avoids vst.msk partial stores); needs a wrapper
    # relayout so it is left out here.
    out = pl.pallas_call(
        kernel,
        out_shape=jax.ShapeDtypeStruct((B, H, Sq, D), Q.dtype),
        grid=grid,
        in_specs=[
            pl.BlockSpec((1, 1, tq, D), lambda b, h, qi, ki: (b, h, qi, 0)),
            pl.BlockSpec((1, 1, tk, D), lambda b, h, qi, ki: (b, h, ki, 0)),
            pl.BlockSpec((1, 1, tk, D), lambda b, h, qi, ki: (b, h, ki, 0)),
            pl.BlockSpec((1, 1, bq, bk), mask_index_map),
        ],
        out_specs=pl.BlockSpec((1, 1, tq, D), lambda b, h, qi, ki: (b, h, qi, 0)),
        scratch_shapes=[
            pltpu.VMEM((tq, 1), jnp.float32),   # running max  m
            pltpu.VMEM((tq, 1), jnp.float32),   # running sum  l
            pltpu.VMEM((tq, D), jnp.float32),   # f32 output accumulator
        ],
        compiler_params=pltpu.CompilerParams(
            dimension_semantics=("parallel", "parallel", "parallel", "arbitrary"),
            vmem_limit_bytes=32 * 1024 * 1024,
        ),
    )(Q, K, V, mask)

    return out


def _reference(Q, K, V, mask):
    # Pure-JAX reference reproducing the PyTorch semantics exactly.
    scores = jnp.einsum("bhqd,bhkd->bhqk", Q, K)
    scores = jnp.where(mask, -1.0e9, scores)
    p = jax.nn.softmax(scores / sqrt(float(Q.shape[-1])), axis=-1)
    return jnp.einsum("bhqk,bhkd->bhqd", p, V)


if __name__ == "__main__":
    key = jax.random.PRNGKey(0)

    # Case 1: small shapes with a fully materialized (B, H, S, S) mask.
    B, H, S, D = 2, 4, 8, 16
    kq, kk, kv, km, k2 = jax.random.split(key, 5)
    Q = jax.random.normal(kq, (B, H, S, D), dtype=jnp.float32)
    K = jax.random.normal(kk, (B, H, S, D), dtype=jnp.float32)
    V = jax.random.normal(kv, (B, H, S, D), dtype=jnp.float32)
    mask = jax.random.bernoulli(km, p=0.25, shape=(B, H, S, S))

    out = jax.block_until_ready(calculate_attention(Q, K, V, mask))
    ref = _reference(Q, K, V, mask)
    assert out.shape == (B, H, S, D)
    # tolerance accounts for approx reciprocal + online-softmax reordering
    assert jnp.allclose(out, ref, atol=5e-3, rtol=5e-3), "mismatch vs reference (case 1)"

    # Case 2: longer sequence (exercises flash tiling over Sq/Sk) with a
    # broadcastable padding-style mask that is never replicated across heads/rows.
    B2, H2, S2, D2 = 1, 2, 1024, 64
    kq2, kk2, kv2, km2 = jax.random.split(k2, 4)
    Q2 = jax.random.normal(kq2, (B2, H2, S2, D2), dtype=jnp.float32)
    K2 = jax.random.normal(kk2, (B2, H2, S2, D2), dtype=jnp.float32)
    V2 = jax.random.normal(kv2, (B2, H2, S2, D2), dtype=jnp.float32)
    mask2 = jax.random.bernoulli(km2, p=0.25, shape=(B2, 1, 1, S2))

    out2 = jax.block_until_ready(calculate_attention(Q2, K2, V2, mask2))
    ref2 = _reference(Q2, K2, V2, mask2)
    assert out2.shape == (B2, H2, S2, D2)
    assert jnp.allclose(out2, ref2, atol=5e-3, rtol=5e-3), "mismatch vs reference (case 2)"

    print("KERNEL_OK")
</pallas_src>

<mosaic_0001>
module attributes {stable_mosaic.version = 11 : i64} {
  func.func @_flash_attn_kernel(%arg0: i32, %arg1: i32, %arg2: i32, %arg3: i32, %arg4: memref<1x1x8x16xf32, #tpu.memory_space<vmem>>, %arg5: memref<1x1x8x16xf32, #tpu.memory_space<vmem>>, %arg6: memref<1x1x8x16xf32, #tpu.memory_space<vmem>>, %arg7: memref<1x1x8x8xi8, #tpu.memory_space<vmem>>, %arg8: memref<1x1x8x16xf32, #tpu.memory_space<vmem>>, %arg9: memref<8x1xf32, #tpu.memory_space<vmem>>, %arg10: memref<8x1xf32, #tpu.memory_space<vmem>>, %arg11: memref<8x16xf32, #tpu.memory_space<vmem>>) attributes {dimension_semantics = [#tpu.dimension_semantics<parallel>, #tpu.dimension_semantics<parallel>, #tpu.dimension_semantics<parallel>, #tpu.dimension_semantics<arbitrary>], iteration_bounds = array<i64: 2, 4, 1, 1>, scalar_prefetch = 0 : i64, scratch_operands = 3 : i64, tpu.core_type = #tpu.core_type<tc>, window_params = [{transform_indices = @transform_0, window_bounds = array<i64: 1, 1, 8, 16>}, {transform_indices = @transform_1, window_bounds = array<i64: 1, 1, 8, 16>}, {transform_indices = @transform_2, window_bounds = array<i64: 1, 1, 8, 16>}, {transform_indices = @transform_3, window_bounds = array<i64: 1, 1, 8, 8>}, {transform_indices = @transform_4, window_bounds = array<i64: 1, 1, 8, 16>}]} {
    %c0_i32 = arith.constant 0 : i32
    %0 = arith.cmpi eq, %arg3, %c0_i32 : i32
    %1 = arith.extui %0 : i1 to i32
    %c0_i32_0 = arith.constant 0 : i32
    %2 = arith.cmpi ne, %1, %c0_i32_0 : i32
    scf.if %2 {
      %cst_35 = arith.constant 0xFF800000 : f32
      %43 = vector.broadcast %cst_35 : f32 to vector<8x1xf32>
      %c0_36 = arith.constant 0 : index
      %c0_37 = arith.constant 0 : index
      %44 = vector.load %arg9[%c0_36, %c0_37] : memref<8x1xf32, #tpu.memory_space<vmem>>, vector<8x1xf32>
      tpu.vector_store %arg9[%c0_36, %c0_37], %43 {strides = array<i32>} : memref<8x1xf32, #tpu.memory_space<vmem>>, vector<8x1xf32>,
      %cst_38 = arith.constant 0.000000e+00 : f32
      %45 = vector.broadcast %cst_38 : f32 to vector<8x1xf32>
      %c0_39 = arith.constant 0 : index
      %c0_40 = arith.constant 0 : index
      %46 = vector.load %arg10[%c0_39, %c0_40] : memref<8x1xf32, #tpu.memory_space<vmem>>, vector<8x1xf32>
      tpu.vector_store %arg10[%c0_39, %c0_40], %45 {strides = array<i32>} : memref<8x1xf32, #tpu.memory_space<vmem>>, vector<8x1xf32>,
      %cst_41 = arith.constant 0.000000e+00 : f32
      %47 = vector.broadcast %cst_41 : f32 to vector<8x16xf32>
      %c0_42 = arith.constant 0 : index
      %c0_43 = arith.constant 0 : index
      %48 = vector.load %arg11[%c0_42, %c0_43] : memref<8x16xf32, #tpu.memory_space<vmem>>, vector<8x16xf32>
      tpu.vector_store %arg11[%c0_42, %c0_43], %47 {strides = array<i32>} : memref<8x16xf32, #tpu.memory_space<vmem>>, vector<8x16xf32>,
    } else {
    }
    %c0 = arith.constant 0 : index
    %c0_1 = arith.constant 0 : index
    %c0_2 = arith.constant 0 : index
    %c0_3 = arith.constant 0 : index
    %3 = vector.load %arg4[%c0, %c0_1, %c0_2, %c0_3] : memref<1x1x8x16xf32, #tpu.memory_space<vmem>>, vector<1x1x8x16xf32>
    %4 = vector.shape_cast %3 : vector<1x1x8x16xf32> to vector<8x16xf32>
    %c0_4 = arith.constant 0 : index
    %c0_5 = arith.constant 0 : index
    %c0_6 = arith.constant 0 : index
    %c0_7 = arith.constant 0 : index
    %5 = vector.load %arg5[%c0_4, %c0_5, %c0_6, %c0_7] : memref<1x1x8x16xf32, #tpu.memory_space<vmem>>, vector<1x1x8x16xf32>
    %6 = vector.shape_cast %5 : vector<1x1x8x16xf32> to vector<8x16xf32>
    %c0_8 = arith.constant 0 : index
    %c0_9 = arith.constant 0 : index
    %c0_10 = arith.constant 0 : index
    %c0_11 = arith.constant 0 : index
    %7 = vector.load %arg6[%c0_8, %c0_9, %c0_10, %c0_11] : memref<1x1x8x16xf32, #tpu.memory_space<vmem>>, vector<1x1x8x16xf32>
    %8 = vector.shape_cast %7 : vector<1x1x8x16xf32> to vector<8x16xf32>
    %c0_12 = arith.constant 0 : index
    %c0_13 = arith.constant 0 : index
    %c0_14 = arith.constant 0 : index
    %c0_15 = arith.constant 0 : index
    %9 = vector.load %arg7[%c0_12, %c0_13, %c0_14, %c0_15] : memref<1x1x8x8xi8, #tpu.memory_space<vmem>>, vector<1x1x8x8xi8>
    %10 = vector.shape_cast %9 : vector<1x1x8x8xi8> to vector<8x8xi8>
    %cst = arith.constant 2.500000e-01 : f32
    %11 = vector.broadcast %cst : f32 to vector<8x16xf32>
    %12 = arith.mulf %4, %11 : vector<8x16xf32>
    %cst_16 = arith.constant dense<0.000000e+00> : vector<8x8xf32>
    %13 = tpu.matmul %12, %6, %cst_16 {dimension_numbers = #tpu.dot_dimension_numbers<[1], [1], [0], [0], [0, 0, 1, 0], [], []>} : vector<8x16xf32>, vector<8x16xf32>, vector<8x8xf32> -> vector<8x8xf32>
    %c0_i8 = arith.constant 0 : i8
    %14 = vector.broadcast %c0_i8 : i8 to vector<8x8xi8>
    %15 = arith.cmpi ne, %10, %14 : vector<8x8xi8>
    %cst_17 = arith.constant -1.000000e+09 : f32
    %16 = vector.broadcast %cst_17 : f32 to vector<8x8xf32>
    %17 = arith.select %15, %16, %13 : vector<8x8xi1>, vector<8x8xf32>
    %c0_18 = arith.constant 0 : index
    %c0_19 = arith.constant 0 : index
    %18 = vector.load %arg9[%c0_18, %c0_19] : memref<8x1xf32, #tpu.memory_space<vmem>>, vector<8x1xf32>
    %cst_20 = arith.constant dense<0xFF800000> : vector<8xf32>
    %19 = vector.multi_reduction <maximumf>, %17, %cst_20 [1] : vector<8x8xf32> to vector<8xf32>
    %20 = vector.shape_cast %19 : vector<8xf32> to vector<8x1xf32>
    %21 = arith.maximumf %18, %20 : vector<8x1xf32>
    %22 = arith.subf %18, %21 : vector<8x1xf32>
    %23 = math.exp %22 : vector<8x1xf32>
    %24 = vector.broadcast %21 : vector<8x1xf32> to vector<8x8xf32>
    %25 = arith.subf %17, %24 : vector<8x8xf32>
    %26 = math.exp %25 : vector<8x8xf32>
    %c0_21 = arith.constant 0 : index
    %c0_22 = arith.constant 0 : index
    %27 = vector.load %arg10[%c0_21, %c0_22] : memref<8x1xf32, #tpu.memory_space<vmem>>, vector<8x1xf32>
    %28 = arith.mulf %23, %27 : vector<8x1xf32>
    %cst_23 = arith.constant dense<0.000000e+00> : vector<8xf32>
    %29 = vector.multi_reduction <add>, %26, %cst_23 [1] : vector<8x8xf32> to vector<8xf32>
    %30 = vector.shape_cast %29 : vector<8xf32> to vector<8x1xf32>
    %31 = arith.addf %28, %30 : vector<8x1xf32>
    %c0_24 = arith.constant 0 : index
    %c0_25 = arith.constant 0 : index
    %32 = vector.load %arg10[%c0_24, %c0_25] : memref<8x1xf32, #tpu.memory_space<vmem>>, vector<8x1xf32>
    tpu.vector_store %arg10[%c0_24, %c0_25], %31 {strides = array<i32>} : memref<8x1xf32, #tpu.memory_space<vmem>>, vector<8x1xf32>,
    %c0_26 = arith.constant 0 : index
    %c0_27 = arith.constant 0 : index
    %33 = vector.load %arg11[%c0_26, %c0_27] : memref<8x16xf32, #tpu.memory_space<vmem>>, vector<8x16xf32>
    %34 = vector.broadcast %23 : vector<8x1xf32> to vector<8x16xf32>
    %35 = arith.mulf %34, %33 : vector<8x16xf32>
    %cst_28 = arith.constant dense<0.000000e+00> : vector<8x16xf32>
    %36 = tpu.matmul %26, %8, %cst_28 {dimension_numbers = #tpu.dot_dimension_numbers<[1], [0], [0], [1], [0, 0, 1, 1], [], []>} : vector<8x8xf32>, vector<8x16xf32>, vector<8x16xf32> -> vector<8x16xf32>
    %37 = arith.addf %35, %36 : vector<8x16xf32>
    %c0_29 = arith.constant 0 : index
    %c0_30 = arith.constant 0 : index
    %38 = vector.load %arg11[%c0_29, %c0_30] : memref<8x16xf32, #tpu.memory_space<vmem>>, vector<8x16xf32>
    tpu.vector_store %arg11[%c0_29, %c0_30], %37 {strides = array<i32>} : memref<8x16xf32, #tpu.memory_space<vmem>>, vector<8x16xf32>,
    %c0_31 = arith.constant 0 : index
    %c0_32 = arith.constant 0 : index
    %39 = vector.load %arg9[%c0_31, %c0_32] : memref<8x1xf32, #tpu.memory_space<vmem>>, vector<8x1xf32>
    tpu.vector_store %arg9[%c0_31, %c0_32], %21 {strides = array<i32>} : memref<8x1xf32, #tpu.memory_space<vmem>>, vector<8x1xf32>,
    %c0_i32_33 = arith.constant 0 : i32
    %40 = arith.cmpi eq, %arg3, %c0_i32_33 : i32
    %41 = arith.extui %40 : i1 to i32
    %c0_i32_34 = arith.constant 0 : i32
    %42 = arith.cmpi ne, %41, %c0_i32_34 : i32
    scf.if %42 {
      %c0_35 = arith.constant 0 : index
      %c0_36 = arith.constant 0 : index
      %43 = vector.load %arg11[%c0_35, %c0_36] : memref<8x16xf32, #tpu.memory_space<vmem>>, vector<8x16xf32>
      %c0_37 = arith.constant 0 : index
      %c0_38 = arith.constant 0 : index
      %44 = vector.load %arg10[%c0_37, %c0_38] : memref<8x1xf32, #tpu.memory_space<vmem>>, vector<8x1xf32>
      %45 = tpu.reciprocal %44 {approx = true} : vector<8x1xf32> -> vector<8x1xf32>
      %46 = vector.broadcast %45 : vector<8x1xf32> to vector<8x16xf32>
      %47 = arith.mulf %43, %46 : vector<8x16xf32>
      %c0_39 = arith.constant 0 : index
      %c0_40 = arith.constant 0 : index
      %c0_41 = arith.constant 0 : index
      %c0_42 = arith.constant 0 : index
      %48 = vector.load %arg8[%c0_39, %c0_40, %c0_41, %c0_42] : memref<1x1x8x16xf32, #tpu.memory_space<vmem>>, vector<1x1x8x16xf32>
      %49 = vector.shape_cast %48 : vector<1x1x8x16xf32> to vector<8x16xf32>
      %50 = vector.shape_cast %47 : vector<8x16xf32> to vector<1x1x8x16xf32>
      tpu.vector_store %arg8[%c0_39, %c0_40, %c0_41, %c0_42], %50 {strides = array<i32>} : memref<1x1x8x16xf32, #tpu.memory_space<vmem>>, vector<1x1x8x16xf32>,
    } else {
    }
    return
  }
  func.func @transform_0(%arg0: i32, %arg1: i32, %arg2: i32, %arg3: i32) -> (i32, i32, i32, i32) {
    %c0_i32 = arith.constant 0 : i32
    %c0_i32_0 = arith.constant 0 : i32
    return %arg0, %arg1, %arg2, %c0_i32 : i32, i32, i32, i32
  }
  func.func @transform_1(%arg0: i32, %arg1: i32, %arg2: i32, %arg3: i32) -> (i32, i32, i32, i32) {
    %c0_i32 = arith.constant 0 : i32
    %c0_i32_0 = arith.constant 0 : i32
    return %arg0, %arg1, %arg3, %c0_i32 : i32, i32, i32, i32
  }
  func.func @transform_2(%arg0: i32, %arg1: i32, %arg2: i32, %arg3: i32) -> (i32, i32, i32, i32) {
    %c0_i32 = arith.constant 0 : i32
    %c0_i32_0 = arith.constant 0 : i32
    return %arg0, %arg1, %arg3, %c0_i32 : i32, i32, i32, i32
  }
  func.func @transform_3(%arg0: i32, %arg1: i32, %arg2: i32, %arg3: i32) -> (i32, i32, i32, i32) {
    %c0_i32 = arith.constant 0 : i32
    return %arg0, %arg1, %arg2, %arg3 : i32, i32, i32, i32
  }
  func.func @transform_4(%arg0: i32, %arg1: i32, %arg2: i32, %arg3: i32) -> (i32, i32, i32, i32) {
    %c0_i32 = arith.constant 0 : i32
    %c0_i32_0 = arith.constant 0 : i32
    return %arg0, %arg1, %arg2, %c0_i32 : i32, i32, i32, i32
  }
}

</mosaic_0001>

<llo_original>
// kernel: tpu_custom_call.1
$region0: #{tpu_custom_call.1}
  #allocation0 [shape = 'u32[]', space=smem, size = 0x4, offset = 0x4, fixed_abs, tag = 'smem constant byte address 0x4 - core index']
  #allocation1 [shape = 'u32[144,128]{1,0:T(1,128)}', space=vmem, size = 0x12000, scoped, tag = 'internal scratch']
  #allocation2 [shape = 'f32[8,1]{1,0:T(8,128)}', space=vmem, size = 0x1000, scoped, tag = 'scratch operand']
  #allocation3 [shape = 'f32[8,1]{1,0:T(8,128)}', space=vmem, size = 0x1000, scoped, tag = 'scratch operand']
  #allocation4 [shape = 'f32[8,16]{1,0:T(8,128)}', space=vmem, size = 0x1000, scoped, tag = 'scratch operand']
  %s0 = inlined_call_operand.hbm [shape: f32[2,4,8,16], index: 0, kind: input, shape index: {}]
  %s1 = inlined_call_operand.hbm [shape: f32[2,4,8,16], index: 1, kind: input, shape index: {}]
  %s2 = inlined_call_operand.hbm [shape: f32[2,4,8,16], index: 2, kind: input, shape index: {}]
  %s3 = inlined_call_operand.hbm [shape: s8[2,4,8,8], index: 3, kind: input, shape index: {}]
  %s4 = inlined_call_operand.hbm [shape: f32[2,4,8,16], index: 4, kind: output, shape index: {}]
  %s5 = sld [smem:[#allocation0]]
  $region73: #{tpu_custom_call.1} parent=0
    _
  %s7 = ssub.s32 1, %s5
  %s8 = scalar_select 0, %s7, %s5
  $region1: #{tpu_custom_call.1} parent=0
    #allocation5 [shape = 'u8[8192]{0}', space=vmem, size = 0x2000, scoped, tag = 'input window, operand 0']
    #allocation6 [shape = 's32[2]{0}', space=sflag, size = 0x8, scoped, tag = 'scoped memory for tpu_custom_call.1']
    #allocation7 [shape = 's32[2]{0}', space=sflag, size = 0x8, scoped, tag = 'scoped memory for tpu_custom_call.1']
    #allocation8 [shape = 'u8[8192]{0}', space=vmem, size = 0x2000, scoped, tag = 'input window, operand 1']
    #allocation9 [shape = 's32[2]{0}', space=sflag, size = 0x8, scoped, tag = 'scoped memory for tpu_custom_call.1']
    #allocation10 [shape = 'u8[8192]{0}', space=vmem, size = 0x2000, scoped, tag = 'input window, operand 2']
    #allocation11 [shape = 'u8[2048]{0}', space=vmem, size = 0x800, scoped, tag = 'input window, operand 3']
    #allocation12 [shape = 's32[2]{0}', space=sflag, size = 0x8, scoped, tag = 'scoped memory for tpu_custom_call.1']
    #allocation13 [shape = 'u8[8192]{0}', space=vmem, size = 0x2000, scoped, tag = 'output window, operand 0']
    %9 = vsyncpa [#allocation6], 0
    %s10 = scalar_lea.sflag [#allocation6], 1
    %11 = vsyncpa %s10, 0
    %12 = vsyncpa [#allocation9], 0
    %s13 = scalar_lea.sflag [#allocation9], 1
    %14 = vsyncpa %s13, 0
    %15 = vsyncpa [#allocation12], 0
    %s16 = scalar_lea.sflag [#allocation12], 1
    %17 = vsyncpa %s16, 0
    %18 = vsyncpa [#allocation7], 0
    %s19 = scalar_lea.sflag [#allocation7], 1
    %20 = vsyncpa %s19, 0
    loop: start=0, step=1, limit=10
    $region2: #{tpu_custom_call.1} parent=1 // loop_pre_header
      _
    $region3: #{tpu_custom_call.1} parent=1 // loop_header
      %s22 = sphi 0, %s26
      %p23 = scmp.ge.s32.totalorder %s22, 10
      %s29 = sphi 0, %s55
      %s30 = sphi 0, %s51
      %s31 = sphi 0, %s47
      %s32 = sphi 0, %s43
      %s33 = sphi 0, %s29
      %s34 = sphi 0, %s30
      %s35 = sphi 0, %s31
      %s36 = sphi 0, %s32
      %s37 = sphi 0, %s33
      %s38 = sphi 0, %s34
      %s39 = sphi 0, %s35
      %s40 = sphi 0, %s36
      %s62 = sphi 0, %s64
      %s65 = sphi 0, %s62
      %s66 = sphi 0, %s65
      %s82 = sphi 0, %s66
      %s92 = sphi 0, %s94
      %s95 = sphi 0, %s92
      %s96 = sphi 0, %s95
      %s112 = sphi 0, %s96
      %s122 = sphi 0, %s124
      %s125 = sphi 0, %s122
      %s126 = sphi 0, %s125
      %s142 = sphi 0, %s126
      %s154 = sphi 0, %s156
      %s157 = sphi 0, %s154
      %s158 = sphi 0, %s157
      %s174 = sphi 0, %s158
      %s184 = sphi 0, %s186
      %s187 = sphi 0, %s184
      %s188 = sphi 0, %s187
      %s204 = sphi 0, %s188
    $region4: #{tpu_custom_call.1} parent=1 // loop_header_branch
      %25 = sbr.rel (%p23) target = $region8
    $region5: #{tpu_custom_call.1} parent=1 // loop_body
      %s27 = ssub.s32 %s22, 1
      %s28 = ssub.s32 %s22, 2
      %s41 = sadd.s32 1, %s32
      %p42 = scmp.ge.s32.totalorder %s41, 1
      %s43 = scalar_select %p42, 0, %s41
      %s44 = sadd.s32 1, %s31
      %s45 = scalar_select %p42, %s44, %s31
      %p46 = scmp.ge.s32.totalorder %s45, 1
      %s47 = scalar_select %p46, 0, %s45
      %s48 = sadd.s32 1, %s30
      %s49 = scalar_select %p46, %s48, %s30
      %p50 = scmp.ge.s32.totalorder %s49, 4
      %s51 = scalar_select %p50, 0, %s49
      %s52 = sadd.s32 1, %s29
      %s53 = scalar_select %p50, %s52, %s29
      %p54 = scmp.ge.s32.totalorder %s53, 2
      %s55 = scalar_select %p54, 0, %s53
      %s56 = ssub.s32 %s29, %s55
      %s57 = ssub.s32 %s30, %s51
      %s58 = sor.u32 %s56, %s57
      %s59 = ssub.s32 %s31, %s47
      %s60 = sor.u32 %s58, %s59
      %p61 = scmp.eq.s32.totalorder %s60, 0
      %s63 = sadd.s32 %s62, 1
      %s64 = scalar_select %p61, %s62, %s63
      %p67 = pneg %p61
      %p68 = scmp.eq.s32.totalorder %s22, 7
      %p69 = por %p67, %p68
      %p70 = scmp.ne.s32.totalorder %s62, %s65
      %p71 = scmp.eq.s32.totalorder %s22, 0
      %p72 = por %p70, %p71
      %p73 = scmp.ne.s32.totalorder %s62, %s65
      %p74 = scmp.eq.s32.totalorder %s27, 7
      %p75 = por %p73, %p74
      %p76 = scmp.ne.s32.totalorder %s65, %s66
      %p77 = scmp.eq.s32.totalorder %s27, 0
      %p78 = por %p76, %p77
      %p79 = scmp.ne.s32.totalorder %s65, %s66
      %p80 = scmp.eq.s32.totalorder %s28, 7
      %p81 = por %p79, %p80
      %p83 = scmp.ne.s32.totalorder %s66, %s82
      %p84 = scmp.eq.s32.totalorder %s28, 0
      %p85 = por %p83, %p84
      %s86 = ssub.s32 %s29, %s55
      %s87 = ssub.s32 %s30, %s51
      %s88 = sor.u32 %s86, %s87
      %s89 = ssub.s32 %s32, %s43
      %s90 = sor.u32 %s88, %s89
      %p91 = scmp.eq.s32.totalorder %s90, 0
      %s93 = sadd.s32 %s92, 1
      %s94 = scalar_select %p91, %s92, %s93
      %p97 = pneg %p91
      %p98 = scmp.eq.s32.totalorder %s22, 7
      %p99 = por %p97, %p98
      %p100 = scmp.ne.s32.totalorder %s92, %s95
      %p101 = scmp.eq.s32.totalorder %s22, 0
      %p102 = por %p100, %p101
      %p103 = scmp.ne.s32.totalorder %s92, %s95
      %p104 = scmp.eq.s32.totalorder %s27, 7
      %p105 = por %p103, %p104
      %p106 = scmp.ne.s32.totalorder %s95, %s96
      %p107 = scmp.eq.s32.totalorder %s27, 0
      %p108 = por %p106, %p107
      %p109 = scmp.ne.s32.totalorder %s95, %s96
      %p110 = scmp.eq.s32.totalorder %s28, 7
      %p111 = por %p109, %p110
      %p113 = scmp.ne.s32.totalorder %s96, %s112
      %p114 = scmp.eq.s32.totalorder %s28, 0
      %p115 = por %p113, %p114
      %s116 = ssub.s32 %s29, %s55
      %s117 = ssub.s32 %s30, %s51
      %s118 = sor.u32 %s116, %s117
      %s119 = ssub.s32 %s32, %s43
      %s120 = sor.u32 %s118, %s119
      %p121 = scmp.eq.s32.totalorder %s120, 0
      %s123 = sadd.s32 %s122, 1
      %s124 = scalar_select %p121, %s122, %s123
      %p127 = pneg %p121
      %p128 = scmp.eq.s32.totalorder %s22, 7
      %p129 = por %p127, %p128
      %p130 = scmp.ne.s32.totalorder %s122, %s125
      %p131 = scmp.eq.s32.totalorder %s22, 0
      %p132 = por %p130, %p131
      %p133 = scmp.ne.s32.totalorder %s122, %s125
      %p134 = scmp.eq.s32.totalorder %s27, 7
      %p135 = por %p133, %p134
      %p136 = scmp.ne.s32.totalorder %s125, %s126
      %p137 = scmp.eq.s32.totalorder %s27, 0
      %p138 = por %p136, %p137
      %p139 = scmp.ne.s32.totalorder %s125, %s126
      %p140 = scmp.eq.s32.totalorder %s28, 7
      %p141 = por %p139, %p140
      %p143 = scmp.ne.s32.totalorder %s126, %s142
      %p144 = scmp.eq.s32.totalorder %s28, 0
      %p145 = por %p143, %p144
      %s146 = ssub.s32 %s29, %s55
      %s147 = ssub.s32 %s30, %s51
      %s148 = sor.u32 %s146, %s147
      %s149 = ssub.s32 %s31, %s47
      %s150 = sor.u32 %s148, %s149
      %s151 = ssub.s32 %s32, %s43
      %s152 = sor.u32 %s150, %s151
      %p153 = scmp.eq.s32.totalorder %s152, 0
      %s155 = sadd.s32 %s154, 1
      %s156 = scalar_select %p153, %s154, %s155
      %p159 = pneg %p153
      %p160 = scmp.eq.s32.totalorder %s22, 7
      %p161 = por %p159, %p160
      %p162 = scmp.ne.s32.totalorder %s154, %s157
      %p163 = scmp.eq.s32.totalorder %s22, 0
      %p164 = por %p162, %p163
      %p165 = scmp.ne.s32.totalorder %s154, %s157
      %p166 = scmp.eq.s32.totalorder %s27, 7
      %p167 = por %p165, %p166
      %p168 = scmp.ne.s32.totalorder %s157, %s158
      %p169 = scmp.eq.s32.totalorder %s27, 0
      %p170 = por %p168, %p169
      %p171 = scmp.ne.s32.totalorder %s157, %s158
      %p172 = scmp.eq.s32.totalorder %s28, 7
      %p173 = por %p171, %p172
      %p175 = scmp.ne.s32.totalorder %s158, %s174
      %p176 = scmp.eq.s32.totalorder %s28, 0
      %p177 = por %p175, %p176
      %s178 = ssub.s32 %s29, %s55
      %s179 = ssub.s32 %s30, %s51
      %s180 = sor.u32 %s178, %s179
      %s181 = ssub.s32 %s31, %s47
      %s182 = sor.u32 %s180, %s181
      %p183 = scmp.eq.s32.totalorder %s182, 0
      %s185 = sadd.s32 %s184, 1
      %s186 = scalar_select %p183, %s184, %s185
      %p189 = pneg %p183
      %p190 = scmp.eq.s32.totalorder %s22, 7
      %p191 = por %p189, %p190
      %p192 = scmp.ne.s32.totalorder %s184, %s187
      %p193 = scmp.eq.s32.totalorder %s22, 0
      %p194 = por %p192, %p193
      %p195 = scmp.ne.s32.totalorder %s184, %s187
      %p196 = scmp.eq.s32.totalorder %s27, 7
      %p197 = por %p195, %p196
      %p198 = scmp.ne.s32.totalorder %s187, %s188
      %p199 = scmp.eq.s32.totalorder %s27, 0
      %p200 = por %p198, %p199
      %p201 = scmp.ne.s32.totalorder %s187, %s188
      %p202 = scmp.eq.s32.totalorder %s28, 7
      %p203 = por %p201, %p202
      %p205 = scmp.ne.s32.totalorder %s188, %s204
      %p206 = scmp.eq.s32.totalorder %s28, 0
      %p207 = por %p205, %p206
      %p208 = scmp.le.s32.totalorder 1, %s22
      %p209 = scmp.lt.s32.totalorder %s22, 9
      %p210 = pnand %p208, %p209
      %p211 = pneg %p210
      // Predicated region
      $region9: #{tpu_custom_call.1} parent=5 // pred_check
        _
      $region10: #{tpu_custom_call.1} parent=5 // pred_check_branch
        %213 = sbr.rel (%p210) target = $region12
      $region11: #{tpu_custom_call.1} parent=5 // pred_region
        %s214 = ssub.s32 %s22, 1
      $region12: #{tpu_custom_call.1} parent=5 // pred_fallthru
        _
      %p215 = scmp.lt.s32.totalorder %s22, 8
      // Predicated region
      $region13: #{tpu_custom_call.1} parent=5 // pred_check
        %p216 = pneg %p215
      $region14: #{tpu_custom_call.1} parent=5 // pred_check_branch
        %218 = sbr.rel (%p216) target = $region16
      $region15: #{tpu_custom_call.1} parent=5 // pred_region
        // Predicated region
        $region17: #{tpu_custom_call.1} parent=15 // pred_check
          %p219 = pneg %p72
        $region18: #{tpu_custom_call.1} parent=15 // pred_check_branch
          %221 = sbr.rel (%p219) target = $region20
        $region19: #{tpu_custom_call.1} parent=15 // pred_region
          %s222 = sand.u32 %s62, 1
          %s223 = scalar_lea.sflag [#allocation6], %s222
          %s224 = sand.u32 %s62, 1
          %s225 = smul.addr %s224, 8
          %s226 = scalar_lea.vmem [#allocation5], %s225
          %s228 = ssub.s32 128, 128
          %229 = vsyncadd %s223, %s228
          %s230 = sadd.s32 %s31, %s30
          %s231 = smul.addr %s29, 4
          %s232 = sadd.s32 %s230, %s231
          %s233 = smul.addr %s232, 128
          %s234 = scalar_lea.hbm %s0, %s233
          %s236 = sshll.u32 %s226, 4
          %s237 = int_to_ptr.vmem [resolvable:$true] %s236
          %239 = dma.hbm_to_vmem [thread:$0]  %s234, 128, %s237, %s223
        $region20: #{tpu_custom_call.1} parent=15 // pred_fallthru
          _
        // Predicated region
        $region21: #{tpu_custom_call.1} parent=15 // pred_check
          %p240 = pneg %p102
        $region22: #{tpu_custom_call.1} parent=15 // pred_check_branch
          %242 = sbr.rel (%p240) target = $region24
        $region23: #{tpu_custom_call.1} parent=15 // pred_region
          %s243 = sand.u32 %s22, 1
          %s244 = scalar_lea.sflag [#allocation9], %s243
          %s245 = sand.u32 %s92, 1
          %s246 = smul.addr %s245, 8
          %s247 = scalar_lea.vmem [#allocation8], %s246
          %s249 = ssub.s32 128, 128
          %250 = vsyncadd %s244, %s249
          %s251 = sadd.s32 %s32, %s30
          %s252 = smul.addr %s29, 4
          %s253 = sadd.s32 %s251, %s252
          %s254 = smul.addr %s253, 128
          %s255 = scalar_lea.hbm %s1, %s254
          %s257 = sshll.u32 %s247, 4
          %s258 = int_to_ptr.vmem [resolvable:$true] %s257
          %260 = dma.hbm_to_vmem [thread:$0]  %s255, 128, %s258, %s244
        $region24: #{tpu_custom_call.1} parent=15 // pred_fallthru
          _
        // Predicated region
        $region25: #{tpu_custom_call.1} parent=15 // pred_check
          %p261 = pneg %p132
        $region26: #{tpu_custom_call.1} parent=15 // pred_check_branch
          %263 = sbr.rel (%p261) target = $region28
        $region27: #{tpu_custom_call.1} parent=15 // pred_region
          %s264 = sand.u32 %s22, 1
          %s265 = scalar_lea.sflag [#allocation9], %s264
          %s266 = sand.u32 %s122, 1
          %s267 = smul.addr %s266, 8
          %s268 = scalar_lea.vmem [#allocation10], %s267
          %s270 = ssub.s32 128, 128
          %271 = vsyncadd %s265, %s270
          %s272 = sadd.s32 %s32, %s30
          %s273 = smul.addr %s29, 4
          %s274 = sadd.s32 %s272, %s273
          %s275 = smul.addr %s274, 128
          %s276 = scalar_lea.hbm %s2, %s275
          %s278 = sshll.u32 %s268, 4
          %s279 = int_to_ptr.vmem [resolvable:$true] %s278
          %281 = dma.hbm_to_vmem [thread:$0]  %s276, 128, %s279, %s265
        $region28: #{tpu_custom_call.1} parent=15 // pred_fallthru
          _
        // Predicated region
        $region29: #{tpu_custom_call.1} parent=15 // pred_check
          %p282 = pneg %p164
        $region30: #{tpu_custom_call.1} parent=15 // pred_check_branch
          %284 = sbr.rel (%p282) target = $region32
        $region31: #{tpu_custom_call.1} parent=15 // pred_region
          %s285 = sand.u32 %s154, 1
          %s286 = scalar_lea.sflag [#allocation12], %s285
          %s287 = sand.u32 %s154, 1
          %s288 = smul.addr %s287, 2
          %s289 = scalar_lea.vmem [#allocation11], %s288
          %s291 = ssub.s32 32, 32
          %292 = vsyncadd %s286, %s291
          %s293 = sadd.s32 %s32, %s31
          %s294 = sadd.s32 %s293, %s30
          %s295 = smul.addr %s29, 4
          %s296 = sadd.s32 %s294, %s295
          %s297 = smul.addr %s296, 32
          %s298 = scalar_lea.hbm %s3, %s297
          %s300 = sshll.u32 %s289, 4
          %s301 = int_to_ptr.vmem [resolvable:$true] %s300
          %303 = dma.hbm_to_vmem [thread:$0]  %s298, 32, %s301, %s286
        $region32: #{tpu_custom_call.1} parent=15 // pred_fallthru
          _
      $region16: #{tpu_custom_call.1} parent=5 // pred_fallthru
        _
      %p304 = scmp.le.s32.totalorder 1, %s22
      %p305 = scmp.lt.s32.totalorder %s22, 9
      %p306 = pnand %p304, %p305
      %p307 = pneg %p306
      // Predicated region
      $region33: #{tpu_custom_call.1} parent=5 // pred_check
        _
      $region34: #{tpu_custom_call.1} parent=5 // pred_check_branch
        %309 = sbr.rel (%p306) target = $region36
      $region35: #{tpu_custom_call.1} parent=5 // pred_region
        %s310 = ssub.s32 %s22, 1
        %s311 = sand.u32 %s65, 1
        %s312 = scalar_lea.sflag [#allocation6], %s311
        %s313 = sand.u32 %s65, 1
        %s314 = smul.addr %s313, 8
        %s315 = scalar_lea.vmem [#allocation5], %s314
        // Predicated region
        $region37: #{tpu_custom_call.1} parent=35 // pred_check
          %p316 = pneg %p78
        $region38: #{tpu_custom_call.1} parent=35 // pred_check_branch
          %318 = sbr.rel (%p316) target = $region40
        $region39: #{tpu_custom_call.1} parent=35 // pred_region
          %319 = dma.done %s312, 128
        $region40: #{tpu_custom_call.1} parent=35 // pred_fallthru
          _
        %s320 = sand.u32 %s27, 1
        %s321 = scalar_lea.sflag [#allocation9], %s320
        %s322 = sand.u32 %s95, 1
        %s323 = smul.addr %s322, 8
        %s324 = scalar_lea.vmem [#allocation8], %s323
        // Predicated region
        $region41: #{tpu_custom_call.1} parent=35 // pred_check
          %p325 = pneg %p108
        $region42: #{tpu_custom_call.1} parent=35 // pred_check_branch
          %327 = sbr.rel (%p325) target = $region44
        $region43: #{tpu_custom_call.1} parent=35 // pred_region
          %328 = dma.done %s321, 128
        $region44: #{tpu_custom_call.1} parent=35 // pred_fallthru
          _
        %s329 = sand.u32 %s27, 1
        %s330 = scalar_lea.sflag [#allocation9], %s329
        %s331 = sand.u32 %s125, 1
        %s332 = smul.addr %s331, 8
        %s333 = scalar_lea.vmem [#allocation10], %s332
        // Predicated region
        $region45: #{tpu_custom_call.1} parent=35 // pred_check
          %p334 = pneg %p138
        $region46: #{tpu_custom_call.1} parent=35 // pred_check_branch
          %336 = sbr.rel (%p334) target = $region48
        $region47: #{tpu_custom_call.1} parent=35 // pred_region
          %337 = dma.done %s330, 128
        $region48: #{tpu_custom_call.1} parent=35 // pred_fallthru
          _
        %s338 = sand.u32 %s157, 1
        %s339 = scalar_lea.sflag [#allocation12], %s338
        %s340 = sand.u32 %s157, 1
        %s341 = smul.addr %s340, 2
        %s342 = scalar_lea.vmem [#allocation11], %s341
        // Predicated region
        $region49: #{tpu_custom_call.1} parent=35 // pred_check
          %p343 = pneg %p170
        $region50: #{tpu_custom_call.1} parent=35 // pred_check_branch
          %345 = sbr.rel (%p343) target = $region52
        $region51: #{tpu_custom_call.1} parent=35 // pred_region
          %346 = dma.done %s339, 32
        $region52: #{tpu_custom_call.1} parent=35 // pred_fallthru
          _
        %s347 = sand.u32 %s65, 1
        %s348 = scalar_lea.sflag [#allocation6], %s347
        %s349 = sand.u32 %s65, 1
        %s350 = smul.addr %s349, 8
        %s351 = scalar_lea.vmem [#allocation5], %s350
        %p352 = pneg %p78
        %p353 = pneg %p75
        %s354 = sand.u32 %s27, 1
        %s355 = scalar_lea.sflag [#allocation9], %s354
        %s356 = sand.u32 %s95, 1
        %s357 = smul.addr %s356, 8
        %s358 = scalar_lea.vmem [#allocation8], %s357
        %p359 = pneg %p108
        %p360 = pneg %p105
        %s361 = sand.u32 %s27, 1
        %s362 = scalar_lea.sflag [#allocation9], %s361
        %s363 = sand.u32 %s125, 1
        %s364 = smul.addr %s363, 8
        %s365 = scalar_lea.vmem [#allocation10], %s364
        %p366 = pneg %p138
        %p367 = pneg %p135
        %s368 = sand.u32 %s157, 1
        %s369 = scalar_lea.sflag [#allocation12], %s368
        %s370 = sand.u32 %s157, 1
        %s371 = smul.addr %s370, 2
        %s372 = scalar_lea.vmem [#allocation11], %s371
        %p373 = pneg %p170
        %p374 = pneg %p167
        %p375 = pneg %p200
        %p376 = pneg %p197
        %s377 = sand.u32 %s187, 1
        %s378 = scalar_lea.sflag [#allocation7], %s377
        %s379 = sand.u32 %s187, 1
        %s380 = smul.addr %s379, 8
        %s381 = scalar_lea.vmem [#allocation13], %s380
        %p384 = scmp.eq.s32.totalorder %s36, 0
        // Predicated region
        $region53: #{tpu_custom_call.1} parent=35 // pred_check
          %p385 = pneg %p384
        $region54: #{tpu_custom_call.1} parent=35 // pred_check_branch
          %387 = sbr.rel (%p385) target = $region56
        $region55: #{tpu_custom_call.1} parent=35 // pred_region
          %vm388 = vcmask 7168
          %389 = vst.msk [vmem:[#allocation2] sm:$0xff] %vm388, -inf
          %390 = vst.msk [vmem:[#allocation3] sm:$0xff] %vm388, 0.0
          %vm391 = vcmask 130048
          %392 = vst.msk [vmem:[#allocation4] sm:$0xff] %vm391, 0.0
        $region56: #{tpu_custom_call.1} parent=35 // pred_fallthru
          _
        %v393 = vld [vmem:[%s315] sm:$0xff]
        %v394 = vld [vmem:[%s324] sm:$0xff]
        %v395 = vld [vmem:[%s333] sm:$0xff]
        %v396 = vld [vmem:[%s342] sm:$0x3]
        %v397 = vmul.f32 %v393, 0.25
        %vm398 = vcmask 130048
        %v400 = vsel %vm398, %v397, 0
        %v403 = vsel %vm398, %v394, 0
        %405 = vmatprep.subr.mxu0 0.0
        %406 = vmatpush1.xpose.msra.mxu0 %v403
        %407 = vmatprep.subr.mxu0 0.0
        %408 = vmatpush1.xpose.msra.mxu0 0.0
        %409 = vmatprep.subr.mxu0 0.0
        %410 = vmatpush1.xpose.msra.mxu0 0.0
        %411 = vmatprep.subr.mxu0 0.0
        %412 = vmatpush1.xpose.msra.mxu0 0.0
        %413 = vmatprep.subr.mxu0 0.0
        %414 = vmatpush1.xpose.msra.mxu0 0.0
        %415 = vmatprep.subr.mxu0 0.0
        %416 = vmatpush1.xpose.msra.mxu0 0.0
        %417 = vmatprep.subr.mxu0 0.0
        %418 = vmatpush1.xpose.msra.mxu0 0.0
        %419 = vmatprep.subr.mxu0 0.0
        %420 = vmatpush1.xpose.msra.mxu0 0.0
        %421 = vmatprep.subr.mxu0 0.0
        %422 = vmatpush1.xpose.msra.mxu0 0.0
        %423 = vmatprep.subr.mxu0 0.0
        %424 = vmatpush1.xpose.msra.mxu0 0.0
        %425 = vmatprep.subr.mxu0 0.0
        %426 = vmatpush1.xpose.msra.mxu0 0.0
        %427 = vmatprep.subr.mxu0 0.0
        %428 = vmatpush1.xpose.msra.mxu0 0.0
        %429 = vmatprep.subr.mxu0 0.0
        %430 = vmatpush1.xpose.msra.mxu0 0.0
        %431 = vmatprep.subr.mxu0 0.0
        %432 = vmatpush1.xpose.msra.mxu0 0.0
        %433 = vmatprep.subr.mxu0 0.0
        %434 = vmatpush1.xpose.msra.mxu0 0.0
        %435 = vmatprep.subr.mxu0 0.0
        %436 = vmatpush1.xpose.msra.mxu0 0.0
        %437 = vmatprep.subr.mxu0 0.0
        %438 = vmatpush1.xpose.msra.mxu0 0.0
        %439 = vmatprep.subr.mxu0 0.0
        %440 = vmatpush1.xpose.msra.mxu0 0.0
        %441 = vmatprep.subr.mxu0 0.0
        %442 = vmatpush1.xpose.msra.mxu0 0.0
        %443 = vmatprep.subr.mxu0 0.0
        %444 = vmatpush1.xpose.msra.mxu0 0.0
        %445 = vmatprep.subr.mxu0 0.0
        %446 = vmatpush1.xpose.msra.mxu0 0.0
        %447 = vmatprep.subr.mxu0 0.0
        %448 = vmatpush1.xpose.msra.mxu0 0.0
        %449 = vmatprep.subr.mxu0 0.0
        %450 = vmatpush1.xpose.msra.mxu0 0.0
        %451 = vmatprep.subr.mxu0 0.0
        %452 = vmatpush1.xpose.msra.mxu0 0.0
        %453 = vmatprep.subr.mxu0 0.0
        %454 = vmatpush1.xpose.msra.mxu0 0.0
        %455 = vmatprep.subr.mxu0 0.0
        %456 = vmatpush1.xpose.msra.mxu0 0.0
        %457 = vmatprep.subr.mxu0 0.0
        %458 = vmatpush1.xpose.msra.mxu0 0.0
        %459 = vmatprep.subr.mxu0 0.0
        %460 = vmatpush1.xpose.msra.mxu0 0.0
        %461 = vmatprep.subr.mxu0 0.0
        %462 = vmatpush1.xpose.msra.mxu0 0.0
        %463 = vmatprep.subr.mxu0 0.0
        %464 = vmatpush1.xpose.msra.mxu0 0.0
        %465 = vmatprep.subr.mxu0 0.0
        %466 = vmatpush1.xpose.msra.mxu0 0.0
        %467 = vmatprep.subr.mxu0 0.0
        %468 = vmatpush1.xpose.msra.mxu0 0.0
        %469 = vmatprep.mubr.f32.mxu0 0.0
        %470 = vmatmul.mubr.f32.gmra.mrb[0].mxu0 %v400
        %v471 = vpop.f32.mrb[0].mxu0
        %v472 = vadd.f32 0.0, %v471
        %v473 = vpop.f32.mrb[0].mxu0
        %474 = vdwg.mxu0
        %vm475 = vnez %v396
        %v476 = vsel %vm475, 16843009, 0
        %v477 = vunpack.c.0.s8 %v476
        %vm478 = vcmp.ne.s32.totalorder %v477, 0
        %v479 = vsel %vm478, -1e+09, %v472
        %v480 = vld [vmem:[#allocation2] sm:$0xff]
        %vm481 = vcmask 64512
        %v482 = vsel %vm481, %v479, -inf
        %483 = vmax.xlane.f32.xlu0 %v482
        %v484 = vpop.xlane.xlu0 %483
        %v485 = vmax.f32 %v480, %v484
        %v486 = vsub.f32 %v480, %v485
        %v487 = vmul.f32 %v486, 1.442695
        %v488 = vpow.pop %v487
        %490 = vset.pattern.permute.xlu0 0
        %491 = vperm.xlu0 %490, %v485
        %v492 = vpop.permute.xlu0 %491
        %v494 = vsub.f32 %v479, %v492
        %v495 = vmul.f32 %v494, 1.442695
        %v496 = vpow.pop %v495
        %v497 = vld [vmem:[#allocation3] sm:$0xff]
        %v498 = vmul.f32 %v488, %v497
        %v499 = vsel %vm481, %v496, 0.0
        %500 = vadd.xlane.f32.xlu0 %v499
        %v501 = vpop.xlane.xlu0 %500
        %v502 = vadd.f32 %v498, %v501
        %vm503 = vcmask 7168
        %504 = vst.msk [vmem:[#allocation3] sm:$0xff] %vm503, %v502
        %v505 = vld [vmem:[#allocation4] sm:$0xff]
        %507 = vset.pattern.permute.xlu0 0
        %508 = vperm.xlu0 %507, %v488
        %v509 = vpop.permute.xlu0 %508
        %v511 = vmul.f32 %v509, %v505
        %v513 = vsel %vm481, %v496, 0
        %515 = vmatprep.subr.mxu0 0.0
        %516 = vmatpush1.msra.mxu0 %v395
        %517 = vmatprep.subr.mxu0 0.0
        %518 = vmatpush1.msra.mxu0 0.0
        %519 = vmatprep.subr.mxu0 0.0
        %520 = vmatpush1.msra.mxu0 0.0
        %521 = vmatprep.subr.mxu0 0.0
        %522 = vmatpush1.msra.mxu0 0.0
        %523 = vmatprep.subr.mxu0 0.0
        %524 = vmatpush1.msra.mxu0 0.0
        %525 = vmatprep.subr.mxu0 0.0
        %526 = vmatpush1.msra.mxu0 0.0
        %527 = vmatprep.subr.mxu0 0.0
        %528 = vmatpush1.msra.mxu0 0.0
        %529 = vmatprep.subr.mxu0 0.0
        %530 = vmatpush1.msra.mxu0 0.0
        %531 = vmatprep.subr.mxu0 0.0
        %532 = vmatpush1.msra.mxu0 0.0
        %533 = vmatprep.subr.mxu0 0.0
        %534 = vmatpush1.msra.mxu0 0.0
        %535 = vmatprep.subr.mxu0 0.0
        %536 = vmatpush1.msra.mxu0 0.0
        %537 = vmatprep.subr.mxu0 0.0
        %538 = vmatpush1.msra.mxu0 0.0
        %539 = vmatprep.subr.mxu0 0.0
        %540 = vmatpush1.msra.mxu0 0.0
        %541 = vmatprep.subr.mxu0 0.0
        %542 = vmatpush1.msra.mxu0 0.0
        %543 = vmatprep.subr.mxu0 0.0
        %544 = vmatpush1.msra.mxu0 0.0
        %545 = vmatprep.subr.mxu0 0.0
        %546 = vmatpush1.msra.mxu0 0.0
        %547 = vmatprep.subr.mxu0 0.0
        %548 = vmatpush1.msra.mxu0 0.0
        %549 = vmatprep.subr.mxu0 0.0
        %550 = vmatpush1.msra.mxu0 0.0
        %551 = vmatprep.subr.mxu0 0.0
        %552 = vmatpush1.msra.mxu0 0.0
        %553 = vmatprep.subr.mxu0 0.0
        %554 = vmatpush1.msra.mxu0 0.0
        %555 = vmatprep.subr.mxu0 0.0
        %556 = vmatpush1.msra.mxu0 0.0
        %557 = vmatprep.subr.mxu0 0.0
        %558 = vmatpush1.msra.mxu0 0.0
        %559 = vmatprep.subr.mxu0 0.0
        %560 = vmatpush1.msra.mxu0 0.0
        %561 = vmatprep.subr.mxu0 0.0
        %562 = vmatpush1.msra.mxu0 0.0
        %563 = vmatprep.subr.mxu0 0.0
        %564 = vmatpush1.msra.mxu0 0.0
        %565 = vmatprep.subr.mxu0 0.0
        %566 = vmatpush1.msra.mxu0 0.0
        %567 = vmatprep.subr.mxu0 0.0
        %568 = vmatpush1.msra.mxu0 0.0
        %569 = vmatprep.subr.mxu0 0.0
        %570 = vmatpush1.msra.mxu0 0.0
        %571 = vmatprep.subr.mxu0 0.0
        %572 = vmatpush1.msra.mxu0 0.0
        %573 = vmatprep.subr.mxu0 0.0
        %574 = vmatpush1.msra.mxu0 0.0
        %575 = vmatprep.subr.mxu0 0.0
        %576 = vmatpush1.msra.mxu0 0.0
        %577 = vmatprep.subr.mxu0 0.0
        %578 = vmatpush1.msra.mxu0 0.0
        %579 = vmatprep.mubr.f32.mxu0 0.0
        %580 = vmatmul.mubr.f32.gmra.mrb[0].mxu0 %v513
        %v581 = vpop.f32.mrb[0].mxu0
        %v582 = vadd.f32 0.0, %v581
        %v583 = vpop.f32.mrb[0].mxu0
        %584 = vdwg.mxu0
        %v585 = vadd.f32 %v511, %v582
        %586 = vst.msk [vmem:[#allocation4] sm:$0xff] %vm398, %v585
        %587 = vst.msk [vmem:[#allocation2] sm:$0xff] %vm503, %v485
        // Predicated region
        $region57: #{tpu_custom_call.1} parent=35 // pred_check
          %p588 = pneg %p384
        $region58: #{tpu_custom_call.1} parent=35 // pred_check_branch
          %590 = sbr.rel (%p588) target = $region60
        $region59: #{tpu_custom_call.1} parent=35 // pred_region
          %v591 = vld [vmem:[#allocation4] sm:$0xff]
          %v592 = vld [vmem:[#allocation3] sm:$0xff]
          %v593 = vrcp.pop %v592
          %595 = vset.pattern.permute.xlu0 0
          %596 = vperm.xlu0 %595, %v593
          %v597 = vpop.permute.xlu0 %596
          %v599 = vmul.f32 %v591, %v597
          %600 = vst.msk [vmem:[%s381] sm:$0xff] %vm398, %v599
        $region60: #{tpu_custom_call.1} parent=35 // pred_fallthru
          _
        %s601 = sand.u32 %s187, 1
        %s602 = scalar_lea.sflag [#allocation7], %s601
        %s603 = sand.u32 %s187, 1
        %s604 = smul.addr %s603, 8
        %s605 = scalar_lea.vmem [#allocation13], %s604
        // Predicated region
        $region61: #{tpu_custom_call.1} parent=35 // pred_check
          %p606 = pneg %p197
        $region62: #{tpu_custom_call.1} parent=35 // pred_check_branch
          %608 = sbr.rel (%p606) target = $region64
        $region63: #{tpu_custom_call.1} parent=35 // pred_region
          %s610 = ssub.s32 128, 128
          %611 = vsyncadd %s602, %s610
          %s612 = sadd.s32 %s35, %s34
          %s613 = smul.addr %s33, 4
          %s614 = sadd.s32 %s612, %s613
          %s615 = smul.addr %s614, 128
          %s616 = scalar_lea.hbm %s4, %s615
          %s618 = sshll.u32 %s605, 4
          %s619 = int_to_ptr.vmem [resolvable:$true] %s618
          %621 = dma.vmem_to_hbm [thread:$0]  %s619, 128, %s616, %s602
        $region64: #{tpu_custom_call.1} parent=35 // pred_fallthru
          _
      $region36: #{tpu_custom_call.1} parent=5 // pred_fallthru
        _
      %p622 = scmp.le.s32.totalorder 2, %s22
      // Predicated region
      $region65: #{tpu_custom_call.1} parent=5 // pred_check
        %p623 = pneg %p622
      $region66: #{tpu_custom_call.1} parent=5 // pred_check_branch
        %625 = sbr.rel (%p623) target = $region68
      $region67: #{tpu_custom_call.1} parent=5 // pred_region
        %s626 = ssub.s32 %s22, 2
        // Predicated region
        $region69: #{tpu_custom_call.1} parent=67 // pred_check
          %p627 = pneg %p203
        $region70: #{tpu_custom_call.1} parent=67 // pred_check_branch
          %629 = sbr.rel (%p627) target = $region72
        $region71: #{tpu_custom_call.1} parent=67 // pred_region
          %s630 = sand.u32 %s188, 1
          %s631 = scalar_lea.sflag [#allocation7], %s630
          %s632 = sand.u32 %s188, 1
          %s633 = smul.addr %s632, 8
          %s634 = scalar_lea.vmem [#allocation13], %s633
          %635 = dma.done %s631, 128
        $region72: #{tpu_custom_call.1} parent=67 // pred_fallthru
          _
      $region68: #{tpu_custom_call.1} parent=5 // pred_fallthru
        _
    $region6: #{tpu_custom_call.1} parent=1 // loop_footer
      %s26 = sadd.s32 1, %s22
    $region7: #{tpu_custom_call.1} parent=1 // loop_footer_branch
      %21 = sbr.rel target = $region3
    $region8: #{tpu_custom_call.1} parent=1 // loop_exit
      _
    %636 = vsyncpa [#allocation6], 1
    %s637 = scalar_lea.sflag [#allocation6], 1
    %638 = vsyncpa %s637, 1
    %639 = vsyncpa [#allocation9], 1
    %s640 = scalar_lea.sflag [#allocation9], 1
    %641 = vsyncpa %s640, 1
    %642 = vsyncpa [#allocation12], 1
    %s643 = scalar_lea.sflag [#allocation12], 1
    %644 = vsyncpa %s643, 1
    %645 = vsyncpa [#allocation7], 1
    %s646 = scalar_lea.sflag [#allocation7], 1
    %647 = vsyncpa %s646, 1

</llo_original>
